<compile_context>
chip_gen: v7x
topology: tpu7x:2x2x1
jax: 0.10.0
libtpu: 0.0.40
codegen_flags: <defaults>
</compile_context>

<pallas_src>
import functools
import math

import jax
import jax.numpy as jnp
from jax.experimental import pallas as pl
from jax.experimental.pallas import tpu as pltpu


_TARGET_BLOCK_BYTES = 4 * 1024 * 1024   # ~4 MiB per pipelined input tile (85%+ of HBM roofline)
_MIN_SPLIT_BYTES = 2 * 1024 * 1024      # below this, do not force multi-block grids
_MAX_FOLD_LANES = 512                   # cap on folded lane width (mask is LxL f32)


def _round_up(x, m):
    return ((x + m - 1) // m) * m


@functools.lru_cache(maxsize=None)
def _vmem_budgets():
    """(tile_budget_bytes, vmem_limit_bytes) sized for the current TPU generation."""
    try:
        vmem = int(getattr(pltpu.get_tpu_info(), "vmem_capacity_bytes", 0))
    except Exception:  # conservative fallback if the hardware query is unavailable
        vmem = 0
    if vmem >= 100 * 1024 * 1024:        # v5e / v6e: 128 MiB physical VMEM
        return 32 * 1024 * 1024, 64 * 1024 * 1024
    if vmem >= 48 * 1024 * 1024:         # v7x: 64 MiB physical VMEM
        return 16 * 1024 * 1024, 48 * 1024 * 1024
    return 16 * 1024 * 1024, 32 * 1024 * 1024   # unknown: previous safe defaults


def _sublane(itemsize):
    # vreg sublane packing: 8 rows for 4-byte, 16 for 2-byte, 32 for 1-byte dtypes.
    return max(8, 32 // max(int(itemsize), 1))


def _choose_row_tile(n_rows, row_bytes, itemsize):
    """Rows per block for a (rows, lanes) slab, targeting ~4 MiB per block."""
    budget, _ = _vmem_budgets()
    sub = _sublane(itemsize)
    row_bytes = max(int(row_bytes), 1)
    total = n_rows * row_bytes
    # 2x(in) + 2x(out) pipelined copies of each block must fit the tile budget.
    target = min(_TARGET_BLOCK_BYTES, budget // 4)
    tile = max(sub, (max(target // row_bytes, 1) // sub) * sub)
    if total >= _MIN_SPLIT_BYTES and n_rows >= 4 * sub:
        # >= 4 blocks so both v7x TensorCores get >= 2 pipelined blocks each.
        tile = min(tile, _round_up(pl.cdiv(n_rows, 4), sub))
    return n_rows if tile >= n_rows else tile


def _choose_lane_tile(n_lanes, col_bytes, n_batch):
    """Lane tile (multiple of 128 or full extent) for the channel-first path."""
    budget, _ = _vmem_budgets()
    col_bytes = max(int(col_bytes), 1)
    total = max(int(n_batch), 1) * n_lanes * col_bytes
    target = min(_TARGET_BLOCK_BYTES, budget // 4)
    tile = max(128, (max(target // col_bytes, 1) // 128) * 128)
    needed = pl.cdiv(4, max(int(n_batch), 1))   # lane blocks per batch row for >=4 total
    if total >= _MIN_SPLIT_BYTES and n_lanes >= needed * 128:
        tile = min(tile, _round_up(pl.cdiv(n_lanes, needed), 128))
    return n_lanes if tile >= n_lanes else tile


# ----------------------------- kernels --------------------------------------


def _rms_last_kernel(x_ref, g_ref, b_ref, o_ref, *, eps):
    # x_ref: (tm, D); g_ref/b_ref: (1, D) float32 (sqrt(D) already folded into g).
    x = x_ref[...].astype(jnp.float32)
    ss = jnp.sum(x * x, axis=-1, keepdims=True)                  # (tm, 1)
    inv = jax.lax.rsqrt(jnp.maximum(ss, eps * eps))              # 1/max(||x||, eps) on EUP
    o_ref[...] = (x * inv * g_ref[...] + b_ref[...]).astype(o_ref.dtype)


def _rms_last_folded_kernel(x_ref, seg_ref, g_ref, b_ref, o_ref, *, eps):
    # Lane-dense path for dim < 128: lcm(d,128)//d original rows share one
    # lane-dense row of L = lcm(d,128) lanes.  seg_ref is an (L, L)
    # block-diagonal 0/1 matrix; one MXU matmul both computes each segment's
    # sum-of-squares and broadcasts it back to that segment's lanes.
    x = x_ref[...].astype(jnp.float32)                           # (tm, L)
    ssb = jnp.dot(x * x, seg_ref[...], preferred_element_type=jnp.float32)
    inv = jax.lax.rsqrt(jnp.maximum(ssb, eps * eps))
    o_ref[...] = (x * inv * g_ref[...] + b_ref[...]).astype(o_ref.dtype)


def _rms_channel_first_kernel(x_ref, g_ref, b_ref, o_ref, *, eps):
    # x_ref: (1, C, tp) with spatial positions on the lane axis; reduce over C.
    x = x_ref[...].astype(jnp.float32)
    ss = jnp.sum(x * x, axis=1, keepdims=True)                   # (1, 1, tp)
    inv = jax.lax.rsqrt(jnp.maximum(ss, eps * eps))
    o_ref[...] = (x * inv * g_ref[...] + b_ref[...]).astype(o_ref.dtype)


# ----------------------------- launchers ------------------------------------


def _launch_last(x2, g_row, b_row, eps):
    n_rows, d = x2.shape
    tm = _choose_row_tile(n_rows, d * x2.dtype.itemsize, x2.dtype.itemsize)
    _, vmem_limit = _vmem_budgets()
    grid = (pl.cdiv(n_rows, tm),)
    return pl.pallas_call(
        functools.partial(_rms_last_kernel, eps=float(eps)),
        out_shape=jax.ShapeDtypeStruct((n_rows, d), x2.dtype),
        grid_spec=pltpu.PrefetchScalarGridSpec(
            num_scalar_prefetch=0,
            grid=grid,
            in_specs=[
                pl.BlockSpec((tm, d), lambda i: (i, 0)),
                pl.BlockSpec((1, d), lambda i: (0, 0)),
                pl.BlockSpec((1, d), lambda i: (0, 0)),
            ],
            out_specs=pl.BlockSpec((tm, d), lambda i: (i, 0)),
        ),
        compiler_params=pltpu.CompilerParams(
            dimension_semantics=("parallel",),
            vmem_limit_bytes=vmem_limit,
        ),
    )(x2, g_row, b_row)


def _launch_last_folded(x2, g_vec, b_vec, eps, g_fold):
    n_rows, d = x2.shape
    lanes = g_fold * d                                   # == lcm(d, 128), multiple of 128
    nrf = n_rows // g_fold
    xf = x2.reshape(nrf, lanes)                          # free reshape (contiguous row merge)

    ids = jnp.arange(lanes, dtype=jnp.int32) // d
    seg = (ids[:, None] == ids[None, :]).astype(jnp.float32)     # block-diagonal ones
    gt = jnp.tile(g_vec, (g_fold,)).reshape(1, lanes)
    bt = jnp.tile(b_vec, (g_fold,)).reshape(1, lanes)

    tm = _choose_row_tile(nrf, lanes * x2.dtype.itemsize, x2.dtype.itemsize)
    _, vmem_limit = _vmem_budgets()
    grid = (pl.cdiv(nrf, tm),)
    out = pl.pallas_call(
        functools.partial(_rms_last_folded_kernel, eps=float(eps)),
        out_shape=jax.ShapeDtypeStruct((nrf, lanes), x2.dtype),
        grid_spec=pltpu.PrefetchScalarGridSpec(
            num_scalar_prefetch=0,
            grid=grid,
            in_specs=[
                pl.BlockSpec((tm, lanes), lambda i: (i, 0)),
                # Constant index_map -> fetched from HBM once, then reused.
                pl.BlockSpec((lanes, lanes), lambda i: (0, 0)),
                pl.BlockSpec((1, lanes), lambda i: (0, 0)),
                pl.BlockSpec((1, lanes), lambda i: (0, 0)),
            ],
            out_specs=pl.BlockSpec((tm, lanes), lambda i: (i, 0)),
        ),
        compiler_params=pltpu.CompilerParams(
            dimension_semantics=("parallel",),
            vmem_limit_bytes=vmem_limit,
        ),
    )(xf, seg, gt, bt)
    return out.reshape(n_rows, d)


def _launch_channel_first(x3, g_col, b_col, eps):
    n, c, p = x3.shape
    tp = _choose_lane_tile(p, c * x3.dtype.itemsize, n)
    _, vmem_limit = _vmem_budgets()
    grid = (n, pl.cdiv(p, tp))
    return pl.pallas_call(
        functools.partial(_rms_channel_first_kernel, eps=float(eps)),
        out_shape=jax.ShapeDtypeStruct((n, c, p), x3.dtype),
        grid_spec=pltpu.PrefetchScalarGridSpec(
            num_scalar_prefetch=0,
            grid=grid,
            in_specs=[
                pl.BlockSpec((1, c, tp), lambda i, j: (i, 0, j)),
                pl.BlockSpec((1, c, 1), lambda i, j: (0, 0, 0)),
                pl.BlockSpec((1, c, 1), lambda i, j: (0, 0, 0)),
            ],
            out_specs=pl.BlockSpec((1, c, tp), lambda i, j: (i, 0, j)),
        ),
        compiler_params=pltpu.CompilerParams(
            dimension_semantics=("parallel", "parallel"),
            vmem_limit_bytes=vmem_limit,
        ),
    )(x3, g_col, b_col)


# ----------------------------- public API -----------------------------------


def rms_norm(x, gamma, bias=None, *, channel_first=False, eps=1e-12):
    """Pallas RMSNorm matching magvit2_pytorch.RMSNorm.forward()."""
    if channel_first:
        c = int(x.shape[1])
        scale = float(c) ** 0.5
        g = (gamma.reshape(-1).astype(jnp.float32) * scale).reshape(1, c, 1)
        if bias is None:
            b = jnp.zeros((1, c, 1), dtype=jnp.float32)
        else:
            b = bias.reshape(-1).astype(jnp.float32).reshape(1, c, 1)
        n = int(x.shape[0])
        p = 1
        for s in x.shape[2:]:
            p *= int(s)
        # TODO(synk): channel_first inputs whose merged spatial extent is < 128
        # positions still use lane-sparse (masked) stores; a periodic-mask folded
        # path (like the channel-last one) would cover small C*P shapes.
        x3 = x.reshape(n, c, p)          # free reshape: merge (T,)H,W into lanes
        out = _launch_channel_first(x3, g, b, eps)
        return out.reshape(x.shape)

    d = int(x.shape[-1])
    scale = float(d) ** 0.5
    g = gamma.reshape(-1).astype(jnp.float32) * scale
    b = (jnp.zeros((d,), dtype=jnp.float32) if bias is None
         else bias.reshape(-1).astype(jnp.float32))
    n_rows = 1
    for s in x.shape[:-1]:
        n_rows *= int(s)
    x2 = x.reshape(n_rows, d)

    if d < 128 and n_rows > 0:
        lanes = math.lcm(d, 128)
        g_fold = lanes // d
        if g_fold > 1 and lanes <= _MAX_FOLD_LANES and n_rows % g_fold == 0:
            out = _launch_last_folded(x2, g, b, eps, g_fold)
            return out.reshape(x.shape)
    out = _launch_last(x2, g.reshape(1, d), b.reshape(1, d), eps)
    return out.reshape(x.shape)


# ----------------------------- reference & test ------------------------------


def _reference(x, gamma, bias, *, channel_first=False, eps=1e-12):
    axis = 1 if channel_first else -1
    dim = x.shape[axis]
    xf = x.astype(jnp.float32)
    norm = jnp.sqrt(jnp.sum(xf * xf, axis=axis, keepdims=True))
    normed = xf / jnp.maximum(norm, eps)
    g = gamma.reshape(-1).astype(jnp.float32)
    b = (jnp.zeros((dim,), jnp.float32) if bias is None
         else bias.reshape(-1).astype(jnp.float32))
    if channel_first:
        bshape = (1, dim) + (1,) * (x.ndim - 2)
    else:
        bshape = (1,) * (x.ndim - 1) + (dim,)
    g = g.reshape(bshape)
    b = b.reshape(bshape)
    return (normed * (float(dim) ** 0.5) * g + b).astype(x.dtype)


if __name__ == "__main__":
    key = jax.random.PRNGKey(0)
    k1, k2, k3, k4, k5, k6, k7 = jax.random.split(key, 7)

    TOL = dict(atol=1e-4, rtol=1e-4)

    # Case 1: channel_last (attention pre-norm style), dim=32 -> folded lane-dense path.
    dim1 = 32
    x1 = jax.random.normal(k1, (2, 8, dim1), dtype=jnp.float32)
    gamma1 = jnp.ones((dim1,), dtype=jnp.float32)      # nn.Parameter(torch.ones(shape))
    out1 = rms_norm(x1, gamma1, None, channel_first=False)
    jax.block_until_ready(out1)
    assert jnp.allclose(out1, _reference(x1, gamma1, None, channel_first=False), **TOL)

    # Case 2: channel_first NCHW (images=True, bias=True), gamma/bias shape (C,1,1).
    c2 = 4
    x2 = jax.random.normal(k2, (2, c2, 16, 16), dtype=jnp.float32)
    gamma2 = (1.0 + 0.1 * jax.random.normal(k3, (c2, 1, 1))).astype(jnp.float32)
    bias2 = (0.1 * jax.random.normal(k4, (c2, 1, 1))).astype(jnp.float32)
    out2 = rms_norm(x2, gamma2, bias2, channel_first=True)
    jax.block_until_ready(out2)
    assert jnp.allclose(out2, _reference(x2, gamma2, bias2, channel_first=True), **TOL)

    # Case 3: channel_last, dim=256 (>=128 -> plain row-tiled path), learned gamma/bias.
    dim3 = 256
    x3 = jax.random.normal(k5, (2, 8, dim3), dtype=jnp.float32)
    gamma3 = (1.0 + 0.1 * jax.random.normal(k6, (dim3,))).astype(jnp.float32)
    bias3 = (0.1 * jax.random.normal(k7, (dim3,))).astype(jnp.float32)
    out3 = rms_norm(x3, gamma3, bias3, channel_first=False)
    jax.block_until_ready(out3)
    assert jnp.allclose(out3, _reference(x3, gamma3, bias3, channel_first=False), **TOL)

    # Case 4: channel_first NCTHW video tensor (images=False), gamma shape (C,1,1,1).
    c4 = 4
    x4 = jax.random.normal(k1, (2, c4, 3, 8, 8), dtype=jnp.float32)
    gamma4 = jnp.ones((c4, 1, 1, 1), dtype=jnp.float32)
    out4 = rms_norm(x4, gamma4, None, channel_first=True)
    jax.block_until_ready(out4)
    assert jnp.allclose(out4, _reference(x4, gamma4, None, channel_first=True), **TOL)

    # Case 5: channel_last bf16, dim=64 -> folded path with 16-row sublane packing.
    dim5 = 64
    x5 = jax.random.normal(k2, (2, 8, dim5), dtype=jnp.bfloat16)
    gamma5 = jnp.ones((dim5,), dtype=jnp.float32)
    out5 = rms_norm(x5, gamma5, None, channel_first=False)
    jax.block_until_ready(out5)
    assert jnp.allclose(
        out5.astype(jnp.float32),
        _reference(x5, gamma5, None, channel_first=False).astype(jnp.float32),
        atol=2e-2, rtol=2e-2)

    print("KERNEL_OK")
</pallas_src>

<mosaic_0001>
module attributes {stable_mosaic.version = 11 : i64} {
  func.func @_rms_last_folded_kernel(%arg0: i32, %arg1: memref<4x128xf32, #tpu.memory_space<vmem>>, %arg2: memref<128x128xf32, #tpu.memory_space<vmem>>, %arg3: memref<1x128xf32, #tpu.memory_space<vmem>>, %arg4: memref<1x128xf32, #tpu.memory_space<vmem>>, %arg5: memref<4x128xf32, #tpu.memory_space<vmem>>) attributes {dimension_semantics = [#tpu.dimension_semantics<parallel>], iteration_bounds = array<i64: 1>, scalar_prefetch = 0 : i64, scratch_operands = 0 : i64, tpu.core_type = #tpu.core_type<tc>, window_params = [{transform_indices = @transform_0, window_bounds = array<i64: 4, 128>}, {pipeline_mode = #tpu.pipeline_mode<synchronous>, transform_indices = @transform_1, window_bounds = array<i64: 128, 128>}, {pipeline_mode = #tpu.pipeline_mode<synchronous>, transform_indices = @transform_2, window_bounds = array<i64: 1, 128>}, {pipeline_mode = #tpu.pipeline_mode<synchronous>, transform_indices = @transform_3, window_bounds = array<i64: 1, 128>}, {transform_indices = @transform_4, window_bounds = array<i64: 4, 128>}]} {
    %c0 = arith.constant 0 : index
    %c0_0 = arith.constant 0 : index
    %0 = vector.load %arg1[%c0, %c0_0] : memref<4x128xf32, #tpu.memory_space<vmem>>, vector<4x128xf32>
    %1 = arith.mulf %0, %0 : vector<4x128xf32>
    %c0_1 = arith.constant 0 : index
    %c0_2 = arith.constant 0 : index
    %2 = vector.load %arg2[%c0_1, %c0_2] : memref<128x128xf32, #tpu.memory_space<vmem>>, vector<128x128xf32>
    %cst = arith.constant dense<0.000000e+00> : vector<4x128xf32>
    %3 = tpu.matmul %1, %2, %cst {dimension_numbers = #tpu.dot_dimension_numbers<[1], [0], [0], [1], [0, 0, 1, 1], [], []>} : vector<4x128xf32>, vector<128x128xf32>, vector<4x128xf32> -> vector<4x128xf32>
    %cst_3 = arith.constant 1.000000e-24 : f32
    %4 = vector.broadcast %cst_3 : f32 to vector<4x128xf32>
    %5 = arith.maximumf %3, %4 : vector<4x128xf32>
    %6 = math.rsqrt %5 : vector<4x128xf32>
    %7 = arith.mulf %0, %6 : vector<4x128xf32>
    %c0_4 = arith.constant 0 : index
    %c0_5 = arith.constant 0 : index
    %8 = vector.load %arg3[%c0_4, %c0_5] : memref<1x128xf32, #tpu.memory_space<vmem>>, vector<1x128xf32>
    %9 = vector.broadcast %8 : vector<1x128xf32> to vector<4x128xf32>
    %10 = arith.mulf %7, %9 : vector<4x128xf32>
    %c0_6 = arith.constant 0 : index
    %c0_7 = arith.constant 0 : index
    %11 = vector.load %arg4[%c0_6, %c0_7] : memref<1x128xf32, #tpu.memory_space<vmem>>, vector<1x128xf32>
    %12 = vector.broadcast %11 : vector<1x128xf32> to vector<4x128xf32>
    %13 = arith.addf %10, %12 : vector<4x128xf32>
    %c0_8 = arith.constant 0 : index
    %c0_9 = arith.constant 0 : index
    %14 = vector.load %arg5[%c0_8, %c0_9] : memref<4x128xf32, #tpu.memory_space<vmem>>, vector<4x128xf32>
    tpu.vector_store %arg5[%c0_8, %c0_9], %13 {strides = array<i32>} : memref<4x128xf32, #tpu.memory_space<vmem>>, vector<4x128xf32>,
    return
  }
  func.func @transform_0(%arg0: i32) -> (i32, i32) {
    %c0_i32 = arith.constant 0 : i32
    %c0_i32_0 = arith.constant 0 : i32
    return %arg0, %c0_i32 : i32, i32
  }
  func.func @transform_1(%arg0: i32) -> (i32, i32) {
    %c0_i32 = arith.constant 0 : i32
    %c0_i32_0 = arith.constant 0 : i32
    %c0_i32_1 = arith.constant 0 : i32
    return %c0_i32, %c0_i32_0 : i32, i32
  }
  func.func @transform_2(%arg0: i32) -> (i32, i32) {
    %c0_i32 = arith.constant 0 : i32
    %c0_i32_0 = arith.constant 0 : i32
    %c0_i32_1 = arith.constant 0 : i32
    return %c0_i32, %c0_i32_0 : i32, i32
  }
  func.func @transform_3(%arg0: i32) -> (i32, i32) {
    %c0_i32 = arith.constant 0 : i32
    %c0_i32_0 = arith.constant 0 : i32
    %c0_i32_1 = arith.constant 0 : i32
    return %c0_i32, %c0_i32_0 : i32, i32
  }
  func.func @transform_4(%arg0: i32) -> (i32, i32) {
    %c0_i32 = arith.constant 0 : i32
    %c0_i32_0 = arith.constant 0 : i32
    return %arg0, %c0_i32 : i32, i32
  }
}

</mosaic_0001>

<llo_original>
// kernel: tpu_custom_call.1
$region0: #{tpu_custom_call.1}
  #allocation0 [shape = 'u32[]', space=smem, size = 0x4, offset = 0x4, fixed_abs, tag = 'smem constant byte address 0x4 - core index']
  #allocation1 [shape = 'u32[144,128]{1,0:T(1,128)}', space=vmem, size = 0x12000, scoped, tag = 'internal scratch']
  %s0 = inlined_call_operand.hbm [shape: f32[4,128], index: 0, kind: input, shape index: {}]
  %s1 = inlined_call_operand.hbm [shape: f32[128,128], index: 1, kind: input, shape index: {}]
  %s2 = inlined_call_operand.vmem [shape: f32[1,128], index: 2, kind: input, shape index: {}]
  %s3 = inlined_call_operand.vmem [shape: f32[1,128], index: 3, kind: input, shape index: {}]
  %s4 = inlined_call_operand.hbm [shape: f32[4,128], index: 4, kind: output, shape index: {}]
  %s5 = sld [smem:[#allocation0]]
  $region34: #{tpu_custom_call.1} parent=0
    _
  %s7 = ssub.s32 1, %s5
  %s8 = scalar_select 0, %s7, %s5
  $region1: #{tpu_custom_call.1} parent=0
    #allocation2 [shape = 'u8[2048]{0}', space=vmem, size = 0x800, scoped, tag = 'input window, operand 0, single buffered']
    #allocation3 [shape = 's32[1]{0}', space=sflag, size = 0x4, scoped, tag = 'scoped memory for tpu_custom_call.1']
    #allocation4 [shape = 's32[1]{0}', space=sflag, size = 0x4, scoped, tag = 'scoped memory for tpu_custom_call.1']
    #allocation5 [shape = 'u8[65536]{0}', space=vmem, size = 0x10000, scoped, tag = 'input window, operand 1, single buffered']
    #allocation6 [shape = 's32[1]{0}', space=sflag, size = 0x4, scoped, tag = 'scoped memory for tpu_custom_call.1']
    #allocation7 [shape = 'u8[2048]{0}', space=vmem, size = 0x800, scoped, tag = 'output window, operand 0, single buffered']
    %9 = vsyncpa [#allocation3], 0
    %10 = vsyncpa [#allocation6], 0
    %11 = vsyncpa [#allocation4], 0
    // Predicated region
    $region2: #{tpu_custom_call.1} parent=1 // pred_check
      _
    $region3: #{tpu_custom_call.1} parent=1 // pred_check_branch
      %13 = sbr.rel (0) target = $region5
    $region4: #{tpu_custom_call.1} parent=1 // pred_region
      %s15 = ssub.s32 64, 64
      %16 = vsyncadd [#allocation3], %s15
      %s18 = sshll.u32 [#allocation2], 4
      %s19 = int_to_ptr.vmem [resolvable:$true] %s18
      %21 = dma.hbm_to_vmem [thread:$0]  %s0, 64, %s19, [#allocation3]
    $region5: #{tpu_custom_call.1} parent=1 // pred_fallthru
      _
    // Predicated region
    $region6: #{tpu_custom_call.1} parent=1 // pred_check
      _
    $region7: #{tpu_custom_call.1} parent=1 // pred_check_branch
      %23 = sbr.rel (0) target = $region9
    $region8: #{tpu_custom_call.1} parent=1 // pred_region
      %s25 = ssub.s32 2048, 2048
      %26 = vsyncadd [#allocation6], %s25
      %s27 = sshll.u32 [#allocation5], 4
      %s28 = int_to_ptr.vmem [resolvable:$true] %s27
      %33 = dma.hbm_to_vmem [thread:$0]  %s1, 2048, %s28, [#allocation6], 128, 128, 8
    $region9: #{tpu_custom_call.1} parent=1 // pred_fallthru
      _
    // Predicated region
    $region10: #{tpu_custom_call.1} parent=1 // pred_check
      _
    $region11: #{tpu_custom_call.1} parent=1 // pred_check_branch
      %35 = sbr.rel (0) target = $region13
    $region12: #{tpu_custom_call.1} parent=1 // pred_region
      _
    $region13: #{tpu_custom_call.1} parent=1 // pred_fallthru
      _
    // Predicated region
    $region14: #{tpu_custom_call.1} parent=1 // pred_check
      _
    $region15: #{tpu_custom_call.1} parent=1 // pred_check_branch
      %37 = sbr.rel (0) target = $region17
    $region16: #{tpu_custom_call.1} parent=1 // pred_region
      _
    $region17: #{tpu_custom_call.1} parent=1 // pred_fallthru
      _
    // Predicated region
    $region18: #{tpu_custom_call.1} parent=1 // pred_check
      _
    $region19: #{tpu_custom_call.1} parent=1 // pred_check_branch
      %39 = sbr.rel (0) target = $region21
    $region20: #{tpu_custom_call.1} parent=1 // pred_region
      %40 = dma.done [#allocation3], 64
    $region21: #{tpu_custom_call.1} parent=1 // pred_fallthru
      _
    // Predicated region
    $region22: #{tpu_custom_call.1} parent=1 // pred_check
      _
    $region23: #{tpu_custom_call.1} parent=1 // pred_check_branch
      %42 = sbr.rel (0) target = $region25
    $region24: #{tpu_custom_call.1} parent=1 // pred_region
      %43 = dma.done [#allocation6], 2048
    $region25: #{tpu_custom_call.1} parent=1 // pred_fallthru
      _
    %v44 = vld [vmem:[#allocation2] sm:$0xf]
    %v45 = vmul.f32 %v44, %v44
    %v46 = vld [vmem:[#allocation5] sm:$0xff]
    %v47 = vld [vmem:[#allocation5 + $0x8] sm:$0xff]
    %v48 = vld [vmem:[#allocation5 + $0x10] sm:$0xff]
    %v49 = vld [vmem:[#allocation5 + $0x18] sm:$0xff]
    %v50 = vld [vmem:[#allocation5 + $0x20] sm:$0xff]
    %v51 = vld [vmem:[#allocation5 + $0x28] sm:$0xff]
    %v52 = vld [vmem:[#allocation5 + $0x30] sm:$0xff]
    %v53 = vld [vmem:[#allocation5 + $0x38] sm:$0xff]
    %v54 = vld [vmem:[#allocation5 + $0x40] sm:$0xff]
    %v55 = vld [vmem:[#allocation5 + $0x48] sm:$0xff]
    %v56 = vld [vmem:[#allocation5 + $0x50] sm:$0xff]
    %v57 = vld [vmem:[#allocation5 + $0x58] sm:$0xff]
    %v58 = vld [vmem:[#allocation5 + $0x60] sm:$0xff]
    %v59 = vld [vmem:[#allocation5 + $0x68] sm:$0xff]
    %v60 = vld [vmem:[#allocation5 + $0x70] sm:$0xff]
    %v61 = vld [vmem:[#allocation5 + $0x78] sm:$0xff]
    %62 = vmatprep.subr.mxu0 0.0
    %63 = vmatpush1.msra.mxu0 %v46
    %64 = vmatprep.subr.mxu0 0.0
    %65 = vmatpush1.msra.mxu0 %v47
    %66 = vmatprep.subr.mxu0 0.0
    %67 = vmatpush1.msra.mxu0 %v48
    %68 = vmatprep.subr.mxu0 0.0
    %69 = vmatpush1.msra.mxu0 %v49
    %70 = vmatprep.subr.mxu0 0.0
    %71 = vmatpush1.msra.mxu0 %v50
    %72 = vmatprep.subr.mxu0 0.0
    %73 = vmatpush1.msra.mxu0 %v51
    %74 = vmatprep.subr.mxu0 0.0
    %75 = vmatpush1.msra.mxu0 %v52
    %76 = vmatprep.subr.mxu0 0.0
    %77 = vmatpush1.msra.mxu0 %v53
    %78 = vmatprep.subr.mxu0 0.0
    %79 = vmatpush1.msra.mxu0 %v54
    %80 = vmatprep.subr.mxu0 0.0
    %81 = vmatpush1.msra.mxu0 %v55
    %82 = vmatprep.subr.mxu0 0.0
    %83 = vmatpush1.msra.mxu0 %v56
    %84 = vmatprep.subr.mxu0 0.0
    %85 = vmatpush1.msra.mxu0 %v57
    %86 = vmatprep.subr.mxu0 0.0
    %87 = vmatpush1.msra.mxu0 %v58
    %88 = vmatprep.subr.mxu0 0.0
    %89 = vmatpush1.msra.mxu0 %v59
    %90 = vmatprep.subr.mxu0 0.0
    %91 = vmatpush1.msra.mxu0 %v60
    %92 = vmatprep.subr.mxu0 0.0
    %93 = vmatpush1.msra.mxu0 %v61
    %94 = vmatprep.subr.mxu0 0.0
    %95 = vmatpush1.msra.mxu0 0.0
    %96 = vmatprep.subr.mxu0 0.0
    %97 = vmatpush1.msra.mxu0 0.0
    %98 = vmatprep.subr.mxu0 0.0
    %99 = vmatpush1.msra.mxu0 0.0
    %100 = vmatprep.subr.mxu0 0.0
    %101 = vmatpush1.msra.mxu0 0.0
    %102 = vmatprep.subr.mxu0 0.0
    %103 = vmatpush1.msra.mxu0 0.0
    %104 = vmatprep.subr.mxu0 0.0
    %105 = vmatpush1.msra.mxu0 0.0
    %106 = vmatprep.subr.mxu0 0.0
    %107 = vmatpush1.msra.mxu0 0.0
    %108 = vmatprep.subr.mxu0 0.0
    %109 = vmatpush1.msra.mxu0 0.0
    %110 = vmatprep.subr.mxu0 0.0
    %111 = vmatpush1.msra.mxu0 0.0
    %112 = vmatprep.subr.mxu0 0.0
    %113 = vmatpush1.msra.mxu0 0.0
    %114 = vmatprep.subr.mxu0 0.0
    %115 = vmatpush1.msra.mxu0 0.0
    %116 = vmatprep.subr.mxu0 0.0
    %117 = vmatpush1.msra.mxu0 0.0
    %118 = vmatprep.subr.mxu0 0.0
    %119 = vmatpush1.msra.mxu0 0.0
    %120 = vmatprep.subr.mxu0 0.0
    %121 = vmatpush1.msra.mxu0 0.0
    %122 = vmatprep.subr.mxu0 0.0
    %123 = vmatpush1.msra.mxu0 0.0
    %124 = vmatprep.subr.mxu0 0.0
    %125 = vmatpush1.msra.mxu0 0.0
    %126 = vmatprep.mubr.f32.mxu0 0.0
    %127 = vmatmul.mubr.f32.gmra.mrb[0].mxu0 %v45
    %v128 = vpop.f32.mrb[0].mxu0
    %v129 = vadd.f32 0.0, %v128
    %v130 = vpop.f32.mrb[0].mxu0
    %131 = vdwg.mxu0
    %v132 = vmax.f32 %v129, 1e-24
    %v133 = vrsqrt.pop %v132
    %v134 = vmul.f32 %v44, %v133
    %v135 = vld [vmem:[%s2] sm:$0x1]
    %v137 = vlaneseq
    %v138 = vshrl.u32 %v137, 7
    %v139 = vsub.s32 0, %v138
    %v140 = vrot.slane %v135, %v139
    %v142 = vmul.f32 %v134, %v140
    %v143 = vld [vmem:[%s3] sm:$0x1]
    %v145 = vlaneseq
    %v146 = vshrl.u32 %v145, 7
    %v147 = vsub.s32 0, %v146
    %v148 = vrot.slane %v143, %v147
    %v150 = vadd.f32 %v142, %v148
    %151 = vst [vmem:[#allocation7] sm:$0xf] %v150
    // Predicated region
    $region26: #{tpu_custom_call.1} parent=1 // pred_check
      _
    $region27: #{tpu_custom_call.1} parent=1 // pred_check_branch
      %153 = sbr.rel (0) target = $region29
    $region28: #{tpu_custom_call.1} parent=1 // pred_region
      %s155 = ssub.s32 64, 64
      %156 = vsyncadd [#allocation4], %s155
      %s158 = sshll.u32 [#allocation7], 4
      %s159 = int_to_ptr.vmem [resolvable:$true] %s158
      %161 = dma.vmem_to_hbm [thread:$0]  %s159, 64, %s4, [#allocation4]
    $region29: #{tpu_custom_call.1} parent=1 // pred_fallthru
      _
    // Predicated region
    $region30: #{tpu_custom_call.1} parent=1 // pred_check
      _
    $region31: #{tpu_custom_call.1} parent=1 // pred_check_branch
      %163 = sbr.rel (0) target = $region33
    $region32: #{tpu_custom_call.1} parent=1 // pred_region
      %164 = dma.done [#allocation4], 64
    $region33: #{tpu_custom_call.1} parent=1 // pred_fallthru
      _
    %165 = vsyncpa [#allocation3], 1
    %166 = vsyncpa [#allocation6], 1
    %167 = vsyncpa [#allocation4], 1

</llo_original>
